<compile_context>
chip_gen: v5e
topology: v5e:2x2
jax: 0.10.0
libtpu: 0.0.40
codegen_flags: <defaults>
</compile_context>

<pallas_src>
import functools

import jax
import jax.numpy as jnp
from jax.experimental import pallas as pl
from jax.experimental.pallas import tpu as pltpu


# -----------------------------------------------------------------------------
# Fused single-pass kernel: GAP-sum -> K-tap channel conv -> ReLU -> x*(att+1).
# -----------------------------------------------------------------------------
def _lca_fused_kernel(wb_ref, x_ref, o_ref, *, kernel_size):
    """wb_ref: (K+1,) SMEM f32 = [conv_w / HW ..., bias];
    x_ref/o_ref: (Nb, C, HW) VMEM blocks."""
    pad = (kernel_size - 1) // 2
    nb, c, _ = x_ref.shape

    # Per-channel spatial sums, f32 accumulation (the 1/HW lives in wb_ref).
    gsum = jnp.sum(x_ref[...], axis=2, dtype=jnp.float32)              # (Nb, C)

    # K-tap "same" conv over channels == K shifted adds on a zero-padded vector.
    if pad > 0:
        z = jnp.zeros((nb, pad), jnp.float32)
        gp = jnp.concatenate([z, gsum, z], axis=1)                     # (Nb, C+2p)
    else:
        gp = gsum
    att = jnp.zeros((nb, c), jnp.float32)
    for j in range(kernel_size):
        att = att + wb_ref[j] * gp[:, j:j + c]
    att = jnp.maximum(att + wb_ref[kernel_size], 0.0)                  # +bias, ReLU

    # Residual folded into the per-channel scalar; multiply in native dtype.
    scale = (att + 1.0).astype(o_ref.dtype)                            # (Nb, C)
    # Re-read x_ref here: don't hand the scheduler a block-long live value.
    o_ref[...] = x_ref[...] * scale[:, :, None]


# -----------------------------------------------------------------------------
# Two-pass path kernels (used when one feature map exceeds the VMEM budget).
# -----------------------------------------------------------------------------
def _gap_sum_kernel(x_ref, o_ref, *, hw, thw):
    """Accumulate per-channel spatial sums over HW tiles. x_ref: (1, C, thw);
    o_ref: (1, C, 1) f32, resident across the trailing 'arbitrary' HW axis."""
    h = pl.program_id(1)

    @pl.when(h == 0)
    def _():
        o_ref[...] = jnp.zeros_like(o_ref)

    x = x_ref[...].astype(jnp.float32)
    if hw % thw != 0:
        # Partial last tile: out-of-bounds lanes of the input block are
        # undefined, so mask them out of the reduction.
        lane = jax.lax.broadcasted_iota(jnp.int32, x.shape, 2)
        x = jnp.where(h * thw + lane < hw, x, 0.0)
    o_ref[...] += jnp.sum(x, axis=2, keepdims=True)


def _apply_kernel(s_ref, x_ref, o_ref):
    """out = x * (att + 1). s_ref: (1, C, 1); x/o: (1, C, thw).  Out-of-bounds
    lanes of a partial last tile are dropped on the store; no mask needed."""
    o_ref[...] = x_ref[...] * s_ref[...]


# -----------------------------------------------------------------------------
# Generation-aware VMEM budget & tiling helpers.
# -----------------------------------------------------------------------------
def _vmem_budget_bytes():
    """~80% of physical per-TensorCore VMEM (v5e/v6e: 128 MiB, v7x: 64 MiB)."""
    phys = 64 << 20
    try:
        phys = int(getattr(pltpu.get_tpu_info(), "vmem_capacity_bytes", phys))
    except Exception:
        pass
    return max(int(phys * 0.8), 32 << 20)


def _vmem_limit_bytes(budget, *buffer_bytes):
    # Each pipelined buffer is double-buffered; add headroom; never exceed the
    # generation-aware budget (keeps compiler scratch headroom on v7x).
    want = sum(2 * int(b) for b in buffer_bytes) + (4 << 20)
    return int(min(max(want, 32 << 20), budget))


def _pick_batch_block(n, per_img_bytes, fit_cap_imgs):
    """Largest divisor of n that fits VMEM and leaves enough grid steps:
    >= 8 steps (>= 4 per TC on v7x) once blocks reach ~1 MiB, else >= 2 steps."""
    cap = max(1, int(fit_cap_imgs))
    if per_img_bytes * max(1, n // 8) >= (1 << 20):
        cap = min(cap, max(1, n // 8))
    elif n >= 2:
        cap = min(cap, max(1, n // 2))
    nb = 1
    for d in range(1, min(n, cap) + 1):
        if n % d == 0:
            nb = d
    return nb


def _pick_hw_tile(hw, c, itemsize, tile_bytes_cap):
    """Lane-dense (multiple-of-128) HW tile; prefers an exact divisor of HW,
    otherwise the caller uses a cdiv grid with a masked last tile."""
    if hw <= 128:
        return hw
    cap = (int(tile_bytes_cap) // max(c * itemsize, 1)) // 128 * 128
    cap = max(min(cap, hw), 128)
    if cap == hw:
        return hw
    for t in range(cap, 127, -128):
        if hw % t == 0:
            return t
    return cap


# -----------------------------------------------------------------------------
# Wrapper.
# -----------------------------------------------------------------------------
def local_channel_attention(x, params, *, kernel_size,
                            fused_budget_bytes=None, tile_bytes_cap=None):
    """Forward of LocalChannelAttention (live path only; the reference's
    fc1/fc2/fc3 branch is dead code — its result is overwritten — so it is
    omitted instead of executed-and-discarded)."""
    assert kernel_size % 2 == 1, "Kernel size must be odd"
    N, C, H, W = x.shape
    HW = H * W
    pad = (kernel_size - 1) // 2
    itemsize = jnp.dtype(x.dtype).itemsize

    budget = _vmem_budget_bytes()
    # Fold the 1/HW of the GAP mean into the conv weights (kernels reduce w/ SUM).
    w_scaled = params["conv_w"].astype(jnp.float32) / float(HW)         # (K,)
    bias = params["conv_b"].astype(jnp.float32).reshape(1)              # (1,)

    x2 = x.reshape(N, C, HW)
    per_img_bytes = C * HW * itemsize

    # Keep the 2x-traffic fused path as long as double-buffered blocks fit VMEM.
    fused_fit = (budget - (8 << 20)) if fused_budget_bytes is None \
        else int(fused_budget_bytes)

    if 4 * per_img_bytes <= fused_fit:
        # ------------------------- fused single-pass path --------------------
        nb = _pick_batch_block(N, per_img_bytes,
                               fused_fit // max(4 * per_img_bytes, 1))
        xblk = nb * per_img_bytes
        wb = jnp.concatenate([w_scaled, bias])                           # (K+1,)
        # TODO(synk): for N == 1 on v7x this is a single grid step (one TC idle);
        # an HW-tiled variant with a VMEM-resident output would recover it.
        out = pl.pallas_call(
            functools.partial(_lca_fused_kernel, kernel_size=kernel_size),
            out_shape=jax.ShapeDtypeStruct((N, C, HW), x.dtype),
            grid=(N // nb,),
            in_specs=[
                pl.BlockSpec(memory_space=pltpu.MemorySpace.SMEM),       # (K+1,)
                pl.BlockSpec((nb, C, HW), lambda n: (n, 0, 0)),          # x block
            ],
            out_specs=pl.BlockSpec((nb, C, HW), lambda n: (n, 0, 0)),
            compiler_params=pltpu.CompilerParams(
                dimension_semantics=("parallel",),
                vmem_limit_bytes=_vmem_limit_bytes(budget, xblk, xblk),
            ),
        )(wb, x2)
        return out.reshape(N, C, H, W)

    # --------------------------- two-pass path (HW tiled) ---------------------
    if tile_bytes_cap is None:
        tile_bytes_cap = min((budget - (8 << 20)) // 4, 16 << 20)
    thw = _pick_hw_tile(HW, C, itemsize, tile_bytes_cap)
    n_hw = -(-HW // thw)
    tblk = C * thw * itemsize
    # TODO(synk): extremely large C (C * 128 * itemsize > VMEM budget) would also
    # need channel tiling; not implemented.

    # Pass 1: per-channel spatial sums, f32 accumulation over HW tiles.
    gsum = pl.pallas_call(
        functools.partial(_gap_sum_kernel, hw=HW, thw=thw),
        out_shape=jax.ShapeDtypeStruct((N, C, 1), jnp.float32),
        grid=(N, n_hw),
        in_specs=[pl.BlockSpec((1, C, thw), lambda n, h: (n, 0, h))],
        out_specs=pl.BlockSpec((1, C, 1), lambda n, h: (n, 0, 0)),
        compiler_params=pltpu.CompilerParams(
            dimension_semantics=("parallel", "arbitrary"),
            vmem_limit_bytes=_vmem_limit_bytes(budget, tblk),
        ),
    )(x2)

    # Conv over channels as K shifted adds + ReLU + "+1" residual: plain JAX glue.
    g = gsum[:, :, 0]                                                    # (N, C)
    gp = jnp.pad(g, ((0, 0), (pad, pad))) if pad > 0 else g
    att = bias[0] + sum(w_scaled[j] * gp[:, j:j + C] for j in range(kernel_size))
    scale = (jnp.maximum(att, 0.0) + 1.0).astype(x.dtype)[:, :, None]    # (N, C, 1)

    # Pass 2: lane-dense elementwise apply, out = x * (att + 1).
    out = pl.pallas_call(
        _apply_kernel,
        out_shape=jax.ShapeDtypeStruct((N, C, HW), x.dtype),
        grid=(N, n_hw),
        in_specs=[
            pl.BlockSpec((1, C, 1), lambda n, h: (n, 0, 0)),             # scale
            pl.BlockSpec((1, C, thw), lambda n, h: (n, 0, h)),           # x tile
        ],
        out_specs=pl.BlockSpec((1, C, thw), lambda n, h: (n, 0, h)),
        compiler_params=pltpu.CompilerParams(
            dimension_semantics=("parallel", "parallel"),
            vmem_limit_bytes=_vmem_limit_bytes(budget, tblk, tblk),
        ),
    )(scale, x2)
    return out.reshape(N, C, H, W)


def init_params(key, in_channels, kernel_size):
    """Deterministic init matching the module's __init__ shapes (PyTorch-style
    U(-1/sqrt(fan_in), +1/sqrt(fan_in))).  fc1/fc2/fc3 are kept for parameter
    fidelity but are never used in the (live) forward path."""
    c = in_channels
    ks = jax.random.split(key, 8)

    def uni(k, shape, fan_in):
        bound = 1.0 / (fan_in ** 0.5)
        return jax.random.uniform(k, shape, jnp.float32, -bound, bound)

    return {
        "fc1_w": uni(ks[0], (2 * c, c), c),         "fc1_b": uni(ks[1], (2 * c,), c),
        "fc2_w": uni(ks[2], (2 * c, 2 * c), 2 * c), "fc2_b": uni(ks[3], (2 * c,), 2 * c),
        "fc3_w": uni(ks[4], (c, 2 * c), 2 * c),     "fc3_b": uni(ks[5], (c,), 2 * c),
        # nn.Conv1d(1, 1, K) weight has shape (1, 1, K); flattened to (K,) here.
        "conv_w": uni(ks[6], (kernel_size,), kernel_size),
        "conv_b": uni(ks[7], (1,), kernel_size),
    }


if __name__ == "__main__":
    # feature_map_size must equal H (= W) for the reference's GAP(x).view(N,1,C).
    N, C, H, W = 2, 4, 16, 16
    kernel_size = 3

    key = jax.random.PRNGKey(0)
    kx, kx2, kp = jax.random.split(key, 3)
    x = jax.random.normal(kx, (N, C, H, W), jnp.float32)
    params = init_params(kp, C, kernel_size)

    def reference(xin):
        pad = (kernel_size - 1) // 2
        c = xin.shape[1]
        gap = xin.mean(axis=(2, 3))                                      # (N, C)
        gp = jnp.pad(gap, ((0, 0), (pad, pad)))
        att = params["conv_b"][0] + sum(
            params["conv_w"][j] * gp[:, j:j + c] for j in range(kernel_size))
        att = jnp.maximum(att, 0.0)[:, :, None, None]
        return xin * att + xin

    # 1) Default (fused single-pass) path.
    fused_fn = jax.jit(functools.partial(local_channel_attention,
                                         kernel_size=kernel_size))
    out_fused = jax.block_until_ready(fused_fn(x, params))
    err_fused = float(jnp.max(jnp.abs(out_fused - reference(x))))
    assert err_fused < 1e-5, err_fused

    # 2) Force the two-pass (HW-tiled) path with exact-divisor tiles (256 = 2*128).
    split_fn = jax.jit(functools.partial(local_channel_attention,
                                         kernel_size=kernel_size,
                                         fused_budget_bytes=0,
                                         tile_bytes_cap=2048))
    out_split = jax.block_until_ready(split_fn(x, params))
    err_split = float(jnp.max(jnp.abs(out_split - reference(x))))
    assert err_split < 1e-5, err_split

    # 3) Two-pass path with a masked partial last tile (HW=400, thw=128).
    x3 = jax.random.normal(kx2, (N, C, 20, 20), jnp.float32)
    out_mask = jax.block_until_ready(split_fn(x3, params))
    err_mask = float(jnp.max(jnp.abs(out_mask - reference(x3))))
    assert err_mask < 1e-5, err_mask

    print("KERNEL_OK")
</pallas_src>

<mosaic_0001>
module attributes {stable_mosaic.version = 11 : i64} {
  func.func @_lca_fused_kernel(%arg0: i32, %arg1: memref<4xf32, #tpu.memory_space<smem>>, %arg2: memref<1x4x256xf32, #tpu.memory_space<vmem>>, %arg3: memref<1x4x256xf32, #tpu.memory_space<vmem>>) attributes {dimension_semantics = [#tpu.dimension_semantics<parallel>], iteration_bounds = array<i64: 2>, scalar_prefetch = 0 : i64, scratch_operands = 0 : i64, tpu.core_type = #tpu.core_type<tc>, window_params = [{transform_indices = @transform_0, window_bounds = array<i64: 4>}, {transform_indices = @transform_1, window_bounds = array<i64: 1, 4, 256>}, {transform_indices = @transform_2, window_bounds = array<i64: 1, 4, 256>}]} {
    %c0 = arith.constant 0 : index
    %c0_0 = arith.constant 0 : index
    %c0_1 = arith.constant 0 : index
    %0 = vector.load %arg2[%c0, %c0_0, %c0_1] : memref<1x4x256xf32, #tpu.memory_space<vmem>>, vector<1x4x256xf32>
    %cst = arith.constant dense<0.000000e+00> : vector<1x4xf32>
    %1 = vector.multi_reduction <add>, %0, %cst [2] : vector<1x4x256xf32> to vector<1x4xf32>
    %cst_2 = arith.constant 0.000000e+00 : f32
    %2 = vector.broadcast %cst_2 : f32 to vector<1x1xf32>
    %3 = tpu.concatenate %2, %1, %2 in 1 : vector<1x1xf32>, vector<1x4xf32>, vector<1x1xf32> -> vector<1x6xf32>
    %cst_3 = arith.constant 0.000000e+00 : f32
    %4 = vector.broadcast %cst_3 : f32 to vector<1x4xf32>
    %c0_4 = arith.constant 0 : index
    %5 = memref.load %arg1[%c0_4] : memref<4xf32, #tpu.memory_space<smem>>
    %6 = vector.extract_strided_slice %3 {offsets = [0, 0], sizes = [1, 4], strides = [1, 1]} : vector<1x6xf32> to vector<1x4xf32>
    %7 = vector.broadcast %5 : f32 to vector<1x4xf32>
    %8 = arith.mulf %7, %6 : vector<1x4xf32>
    %9 = arith.addf %4, %8 : vector<1x4xf32>
    %c1 = arith.constant 1 : index
    %10 = memref.load %arg1[%c1] : memref<4xf32, #tpu.memory_space<smem>>
    %11 = vector.extract_strided_slice %3 {offsets = [0, 1], sizes = [1, 4], strides = [1, 1]} : vector<1x6xf32> to vector<1x4xf32>
    %12 = vector.broadcast %10 : f32 to vector<1x4xf32>
    %13 = arith.mulf %12, %11 : vector<1x4xf32>
    %14 = arith.addf %9, %13 : vector<1x4xf32>
    %c2 = arith.constant 2 : index
    %15 = memref.load %arg1[%c2] : memref<4xf32, #tpu.memory_space<smem>>
    %16 = vector.extract_strided_slice %3 {offsets = [0, 2], sizes = [1, 4], strides = [1, 1]} : vector<1x6xf32> to vector<1x4xf32>
    %17 = vector.broadcast %15 : f32 to vector<1x4xf32>
    %18 = arith.mulf %17, %16 : vector<1x4xf32>
    %19 = arith.addf %14, %18 : vector<1x4xf32>
    %c3 = arith.constant 3 : index
    %20 = memref.load %arg1[%c3] : memref<4xf32, #tpu.memory_space<smem>>
    %21 = vector.broadcast %20 : f32 to vector<1x4xf32>
    %22 = arith.addf %19, %21 : vector<1x4xf32>
    %cst_5 = arith.constant 0.000000e+00 : f32
    %23 = vector.broadcast %cst_5 : f32 to vector<1x4xf32>
    %24 = arith.maximumf %22, %23 : vector<1x4xf32>
    %cst_6 = arith.constant 1.000000e+00 : f32
    %25 = vector.broadcast %cst_6 : f32 to vector<1x4xf32>
    %26 = arith.addf %24, %25 : vector<1x4xf32>
    %c0_7 = arith.constant 0 : index
    %c0_8 = arith.constant 0 : index
    %c0_9 = arith.constant 0 : index
    %27 = vector.load %arg2[%c0_7, %c0_8, %c0_9] : memref<1x4x256xf32, #tpu.memory_space<vmem>>, vector<1x4x256xf32>
    %28 = vector.shape_cast %26 : vector<1x4xf32> to vector<1x4x1xf32>
    %29 = vector.broadcast %28 : vector<1x4x1xf32> to vector<1x4x256xf32>
    %30 = arith.mulf %27, %29 : vector<1x4x256xf32>
    %c0_10 = arith.constant 0 : index
    %c0_11 = arith.constant 0 : index
    %c0_12 = arith.constant 0 : index
    %31 = vector.load %arg3[%c0_10, %c0_11, %c0_12] : memref<1x4x256xf32, #tpu.memory_space<vmem>>, vector<1x4x256xf32>
    tpu.vector_store %arg3[%c0_10, %c0_11, %c0_12], %30 {strides = array<i32>} : memref<1x4x256xf32, #tpu.memory_space<vmem>>, vector<1x4x256xf32>,
    return
  }
  func.func @transform_0(%arg0: i32) -> i32 {
    %c0_i32 = arith.constant 0 : i32
    %c0_i32_0 = arith.constant 0 : i32
    return %c0_i32 : i32
  }
  func.func @transform_1(%arg0: i32) -> (i32, i32, i32) {
    %c0_i32 = arith.constant 0 : i32
    %c0_i32_0 = arith.constant 0 : i32
    %c0_i32_1 = arith.constant 0 : i32
    return %arg0, %c0_i32, %c0_i32_0 : i32, i32, i32
  }
  func.func @transform_2(%arg0: i32) -> (i32, i32, i32) {
    %c0_i32 = arith.constant 0 : i32
    %c0_i32_0 = arith.constant 0 : i32
    %c0_i32_1 = arith.constant 0 : i32
    return %arg0, %c0_i32, %c0_i32_0 : i32, i32, i32
  }
}

</mosaic_0001>

<llo_original>
// kernel: local_channel_attention.1
$region0: #{local_channel_attention.1}
  #allocation0 [shape = 'u32[]', space=smem, size = 0x4, offset = 0x4, fixed_abs, tag = 'smem constant byte address 0x4 - core index']
  #allocation1 [shape = 'u32[72,128]{1,0:T(1,128)}', space=vmem, size = 0x9000, scoped, tag = 'internal scratch']
  %s0 = inlined_call_operand.vmem [shape: f32[4], index: 0, kind: input, shape index: {}]
  %s1 = inlined_call_operand.vmem [shape: f32[2,4,256], index: 1, kind: input, shape index: {}]
  %s2 = inlined_call_operand.vmem [shape: f32[2,4,256], index: 2, kind: output, shape index: {}]
  %s3 = sld [smem:[#allocation0]]
  $region45: #{local_channel_attention.1} parent=0
    _
  %s5 = ssub.s32 1, %s3
  %s6 = scalar_select 0, %s5, %s3
  $region1: #{local_channel_attention.1} parent=0
    #allocation2 [shape = 'u8[512]{0}', space=smem, size = 0x200, scoped, tag = 'input window, operand 0, single buffered']
    #allocation3 [shape = 's32[2]{0}', space=sflag, size = 0x8, scoped, tag = 'scoped memory for local_channel_attention.1']
    %7 = vsyncpa [#allocation3], 0
    loop: start=0, step=1, limit=4
    $region2: #{local_channel_attention.1} parent=1 // loop_pre_header
      _
    $region3: #{local_channel_attention.1} parent=1 // loop_header
      %s9 = sphi 0, %s13
      %p10 = scmp.ge.s32.totalorder %s9, 4
      %s17 = sphi 0, %s17
      %s19 = sphi 0, %s17
      %s20 = sphi 0, %s19
      %s34 = sphi 0, %s20
      %s40 = sphi 0, %s42
      %s43 = sphi 0, %s40
      %s44 = sphi 0, %s43
      %s60 = sphi 0, %s44
      %s66 = sphi 0, %s68
      %s69 = sphi 0, %s66
      %s70 = sphi 0, %s69
      %s86 = sphi 0, %s70
    $region4: #{local_channel_attention.1} parent=1 // loop_header_branch
      %12 = sbr.rel (%p10) target = $region8
    $region5: #{local_channel_attention.1} parent=1 // loop_body
      %s14 = ssub.s32 %s9, 1
      %s15 = ssub.s32 %s9, 2
      %s16 = sadd.s32 %s9, 1
      %s18 = sadd.s32 %s17, 1
      %p21 = scmp.eq.s32.totalorder %s9, 1
      %p22 = scmp.ne.s32.totalorder %s17, %s19
      %p23 = scmp.eq.s32.totalorder %s9, 0
      %p24 = por %p22, %p23
      %p25 = scmp.ne.s32.totalorder %s17, %s19
      %p26 = scmp.eq.s32.totalorder %s14, 1
      %p27 = por %p25, %p26
      %p28 = scmp.ne.s32.totalorder %s19, %s20
      %p29 = scmp.eq.s32.totalorder %s14, 0
      %p30 = por %p28, %p29
      %p31 = scmp.ne.s32.totalorder %s19, %s20
      %p32 = scmp.eq.s32.totalorder %s15, 1
      %p33 = por %p31, %p32
      %p35 = scmp.ne.s32.totalorder %s20, %s34
      %p36 = scmp.eq.s32.totalorder %s15, 0
      %p37 = por %p35, %p36
      %s38 = ssub.s32 %s9, %s16
      %p39 = scmp.eq.s32.totalorder %s38, 0
      %s41 = sadd.s32 %s40, 1
      %s42 = scalar_select %p39, %s40, %s41
      %p45 = pneg %p39
      %p46 = scmp.eq.s32.totalorder %s9, 1
      %p47 = por %p45, %p46
      %p48 = scmp.ne.s32.totalorder %s40, %s43
      %p49 = scmp.eq.s32.totalorder %s9, 0
      %p50 = por %p48, %p49
      %p51 = scmp.ne.s32.totalorder %s40, %s43
      %p52 = scmp.eq.s32.totalorder %s14, 1
      %p53 = por %p51, %p52
      %p54 = scmp.ne.s32.totalorder %s43, %s44
      %p55 = scmp.eq.s32.totalorder %s14, 0
      %p56 = por %p54, %p55
      %p57 = scmp.ne.s32.totalorder %s43, %s44
      %p58 = scmp.eq.s32.totalorder %s15, 1
      %p59 = por %p57, %p58
      %p61 = scmp.ne.s32.totalorder %s44, %s60
      %p62 = scmp.eq.s32.totalorder %s15, 0
      %p63 = por %p61, %p62
      %s64 = ssub.s32 %s9, %s16
      %p65 = scmp.eq.s32.totalorder %s64, 0
      %s67 = sadd.s32 %s66, 1
      %s68 = scalar_select %p65, %s66, %s67
      %p71 = pneg %p65
      %p72 = scmp.eq.s32.totalorder %s9, 1
      %p73 = por %p71, %p72
      %p74 = scmp.ne.s32.totalorder %s66, %s69
      %p75 = scmp.eq.s32.totalorder %s9, 0
      %p76 = por %p74, %p75
      %p77 = scmp.ne.s32.totalorder %s66, %s69
      %p78 = scmp.eq.s32.totalorder %s14, 1
      %p79 = por %p77, %p78
      %p80 = scmp.ne.s32.totalorder %s69, %s70
      %p81 = scmp.eq.s32.totalorder %s14, 0
      %p82 = por %p80, %p81
      %p83 = scmp.ne.s32.totalorder %s69, %s70
      %p84 = scmp.eq.s32.totalorder %s15, 1
      %p85 = por %p83, %p84
      %p87 = scmp.ne.s32.totalorder %s70, %s86
      %p88 = scmp.eq.s32.totalorder %s15, 0
      %p89 = por %p87, %p88
      %p90 = scmp.le.s32.totalorder 1, %s9
      %p91 = scmp.lt.s32.totalorder %s9, 3
      %p92 = pnand %p90, %p91
      %p93 = pneg %p92
      // Predicated region
      $region9: #{local_channel_attention.1} parent=5 // pred_check
        _
      $region10: #{local_channel_attention.1} parent=5 // pred_check_branch
        %95 = sbr.rel (%p92) target = $region12
      $region11: #{local_channel_attention.1} parent=5 // pred_region
        %s96 = ssub.s32 %s9, 1
        // Predicated region
        $region13: #{local_channel_attention.1} parent=11 // pred_check
          %p97 = pneg %p30
        $region14: #{local_channel_attention.1} parent=11 // pred_check_branch
          %99 = sbr.rel (%p97) target = $region16
        $region15: #{local_channel_attention.1} parent=11 // pred_region
          %101 = vsyncadd [#allocation3], 0
          %s103 = sshll.u32 %s0, 4
          %s104 = int_to_ptr.vmem [resolvable:$true] %s103
          %106 = dma.vmem_to_smem %s104, 16, [#allocation2], [#allocation3]
        $region16: #{local_channel_attention.1} parent=11 // pred_fallthru
          _
      $region12: #{local_channel_attention.1} parent=5 // pred_fallthru
        _
      %p107 = scmp.lt.s32.totalorder %s9, 2
      // Predicated region
      $region17: #{local_channel_attention.1} parent=5 // pred_check
        %p108 = pneg %p107
      $region18: #{local_channel_attention.1} parent=5 // pred_check_branch
        %110 = sbr.rel (%p108) target = $region20
      $region19: #{local_channel_attention.1} parent=5 // pred_region
        // Predicated region
        $region21: #{local_channel_attention.1} parent=19 // pred_check
          %p111 = pneg %p50
        $region22: #{local_channel_attention.1} parent=19 // pred_check_branch
          %113 = sbr.rel (%p111) target = $region24
        $region23: #{local_channel_attention.1} parent=19 // pred_region
          %p114 = scmp.lt.s32.totalorder %s9, 1
          %s115 = scalar_select %p114, %s9, 1
          %s116 = smul.addr %s115, 2
          %s117 = smul.addr %s116, 4
          %s118 = scalar_lea.vmem %s1, %s117
        $region24: #{local_channel_attention.1} parent=19 // pred_fallthru
          _
      $region20: #{local_channel_attention.1} parent=5 // pred_fallthru
        _
      %p119 = scmp.le.s32.totalorder 1, %s9
      %p120 = scmp.lt.s32.totalorder %s9, 3
      %p121 = pnand %p119, %p120
      %p122 = pneg %p121
      // Predicated region
      $region25: #{local_channel_attention.1} parent=5 // pred_check
        _
      $region26: #{local_channel_attention.1} parent=5 // pred_check_branch
        %124 = sbr.rel (%p121) target = $region28
      $region27: #{local_channel_attention.1} parent=5 // pred_region
        %s125 = ssub.s32 %s9, 1
        // Predicated region
        $region29: #{local_channel_attention.1} parent=27 // pred_check
          %p126 = pneg %p30
        $region30: #{local_channel_attention.1} parent=27 // pred_check_branch
          %128 = sbr.rel (%p126) target = $region32
        $region31: #{local_channel_attention.1} parent=27 // pred_region
          %130 = dma.done [#allocation3], 16
        $region32: #{local_channel_attention.1} parent=27 // pred_fallthru
          _
        %131 = sfence
        %p132 = pneg %p30
        %p133 = pneg %p27
        %p134 = scmp.lt.s32.totalorder %s14, 1
        %s135 = scalar_select %p134, %s14, 1
        %s136 = smul.addr %s135, 2
        %s137 = smul.addr %s136, 4
        %s138 = scalar_lea.vmem %s1, %s137
        %p139 = pneg %p56
        %p140 = pneg %p53
        %p141 = pneg %p82
        %p142 = pneg %p79
        %p143 = scmp.lt.s32.totalorder %s14, 1
        %s144 = scalar_select %p143, %s14, 1
        %s145 = smul.addr %s144, 2
        %s146 = smul.addr %s145, 4
        %s147 = scalar_lea.vmem %s2, %s146
        %p148 = scmp.lt.s32.totalorder %s14, 1
        %s149 = scalar_select %p148, %s14, 1
        %s150 = smul.addr %s149, 2
        %s151 = smul.addr %s150, 4
        %s152 = scalar_lea.vmem %s1, %s151
        %p153 = scmp.lt.s32.totalorder %s14, 1
        %s154 = scalar_select %p153, %s14, 1
        %s155 = smul.addr %s154, 2
        %s156 = smul.addr %s155, 4
        %s157 = scalar_lea.vmem %s2, %s156
        %v158 = vld [vmem:[%s152] sm:$0xff]
        %160 = vst [vmem:[#allocation1] ss:$2 sm:$0xff] %v158
        %v161 = vld.sshfl [vmem:[#allocation1] sm:$0xff pattern:$0x75316420]
        %v162 = vld.sshfl [vmem:[#allocation1 + $0x8] sm:$0xff pattern:$0x75316420]
        %vm165 = vcmask 1043456
        %v166 = vsel %vm165, %v161, 0.0
        %v167 = vsel %vm165, %v162, 0.0
        %v168 = vadd.f32 %v166, %v167
        %169 = vadd.xlane.f32.xlu0 %v168
        %v170 = vpop.xlane.xlu0 %169
        %v172 = vlaneseq
        %v173 = vand.u32 %v172, 127
        %v174 = vadd.s32 %v173, 4294967295
        %v175 = vperm.slane %v170, %v174
        %vm177 = vcmask 7168
        %v178 = vsel %vm177, 0.0, %v175
        %vm179 = vcmask 39936
        %v180 = vsel %vm179, %v178, 0.0
        %s181 = sld [smem:[#allocation2]]
        %v182 = vstv %s181
        %v183 = vmul.f32 %v182, %v180
        %v184 = vadd.f32 %v183, 0.0
        %s185 = sld [smem:[#allocation2 + $0x1]]
        %v186 = vstv %s185
        %v187 = vmul.f32 %v186, %v180
        %189 = vrot.lane.b32.xlu0 %v187, 127
        %v190 = vpop.permute.xlu0 %189
        %v192 = vadd.f32 %v184, %v190
        %s193 = sld [smem:[#allocation2 + $0x2]]
        %v194 = vstv %s193
        %v195 = vmul.f32 %v194, %v180
        %197 = vrot.lane.b32.xlu0 %v195, 126
        %v198 = vpop.permute.xlu0 %197
        %v200 = vadd.f32 %v192, %v198
        %s201 = sld [smem:[#allocation2 + $0x3]]
        %v202 = vstv %s201
        %v203 = vadd.f32 %v200, %v202
        %v204 = vmax.f32 %v203, 0.0
        %v205 = vadd.f32 %v204, 1.0
        %v206 = vperm.slane %v205, 0
        %v207 = vlaneseq
        %v208 = vshrl.u32 %v207, 7
        %210 = vset.pattern.permute.xlu0 %v208
        %211 = vperm.xlu0 %210, %v206
        %v212 = vpop.permute.xlu0 %211
        %v215 = vunpack.c.l.s4 839922192
        %v216 = vunpack.c.0.s8 %v215
        %v217 = vperm.slane %v212, %v216
        %v219 = vmul.f32 %v158, %v217
        %220 = vst [vmem:[%s157] sm:$0xff] %v219
        %p221 = scmp.lt.s32.totalorder %s14, 1
        %s222 = scalar_select %p221, %s14, 1
        %s223 = smul.addr %s222, 2
        %s224 = smul.addr %s223, 4
        %s225 = scalar_lea.vmem %s2, %s224
        // Predicated region
        $region33: #{local_channel_attention.1} parent=27 // pred_check
          %p226 = pneg %p79
        $region34: #{local_channel_attention.1} parent=27 // pred_check_branch
          %228 = sbr.rel (%p226) target = $region36
        $region35: #{local_channel_attention.1} parent=27 // pred_region
          _
        $region36: #{local_channel_attention.1} parent=27 // pred_fallthru
          _
      $region28: #{local_channel_attention.1} parent=5 // pred_fallthru
        _
      %p229 = scmp.le.s32.totalorder 2, %s9
      // Predicated region
      $region37: #{local_channel_attention.1} parent=5 // pred_check
        %p230 = pneg %p229
      $region38: #{local_channel_attention.1} parent=5 // pred_check_branch
        %232 = sbr.rel (%p230) target = $region40
      $region39: #{local_channel_attention.1} parent=5 // pred_region
        %s233 = ssub.s32 %s9, 2
        // Predicated region
        $region41: #{local_channel_attention.1} parent=39 // pred_check
          %p234 = pneg %p85
        $region42: #{local_channel_attention.1} parent=39 // pred_check_branch
          %236 = sbr.rel (%p234) target = $region44
        $region43: #{local_channel_attention.1} parent=39 // pred_region
          %p237 = scmp.lt.s32.totalorder %s15, 1
          %s238 = scalar_select %p237, %s15, 1
          %s239 = smul.addr %s238, 2
          %s240 = smul.addr %s239, 4
          %s241 = scalar_lea.vmem %s2, %s240
        $region44: #{local_channel_attention.1} parent=39 // pred_fallthru
          _
      $region40: #{local_channel_attention.1} parent=5 // pred_fallthru
        _
    $region6: #{local_channel_attention.1} parent=1 // loop_footer
      %s13 = sadd.s32 1, %s9
    $region7: #{local_channel_attention.1} parent=1 // loop_footer_branch
      %8 = sbr.rel target = $region3
    $region8: #{local_channel_attention.1} parent=1 // loop_exit
      _
    %242 = vsyncpa [#allocation3], 1
    %s243 = scalar_lea.sflag [#allocation3], 1
    %244 = vsyncpa %s243, 1

</llo_original>
